<compile_context>
chip_gen: v7x
topology: tpu7x:2x2x1
jax: 0.10.0
libtpu: 0.0.40
codegen_flags: <defaults>
</compile_context>

<pallas_src>
import functools

import jax
import jax.numpy as jnp
import numpy as np
from jax.experimental import pallas as pl
from jax.experimental.pallas import tpu as pltpu


def _soft_hist_kernel(x_ref, edges_ref, o_ref, *, half_sigma, bins_pad, chunk,
                      chunks_per_tile, unroll):
    """x_ref: (1, tile) f32; edges_ref: (epad, chunk) pre-scaled edges;
    o_ref: (bins_pad, chunk) per-partition per-bin accumulator."""

    # Fresh accumulator at the start of each partition's reduction axis.
    @pl.when(pl.program_id(1) == 0)
    def _():
        o_ref[...] = jnp.zeros_like(o_ref)

    # Hoisted: edges stay vreg-resident for the whole tile (no per-chunk reload).
    edges = edges_ref[...]

    def body(j, acc):
        start = pl.multiple_of(j * chunk, chunk)
        # (1, chunk): data elements stay on the lane axis; scale folds sigma/2 into x.
        xs = x_ref[:, pl.ds(start, chunk)] * half_sigma
        # (epad, chunk): sublane-broadcast of xs minus lane-dense, pre-scaled edges.
        # Per-edge accumulation only -> no sublane-offset slice in the hot loop.
        return acc + jnp.tanh(xs - edges)

    acc = jax.lax.fori_loop(0, chunks_per_tile, body,
                            jnp.zeros_like(edges), unroll=unroll)

    # Adjacent-edge difference == per-bin soft count (up to the global 0.5 factor),
    # done once per tile; keeps per-bin accumulator magnitudes small and o_ref aligned.
    o_ref[...] += acc[:bins_pad, :] - acc[1:bins_pad + 1, :]


def _default_num_partitions():
    """2 on v7x (2 TensorCores/chip); 1 on v5e/v6e where a second partition is overhead."""
    try:
        kind = jax.devices()[0].device_kind.lower()
    except Exception:
        return 1
    return 2 if "v7" in kind else 1


def soft_histogram(x, *, bins, vmin, vmax, sigma, chunk=128,
                   max_chunks_per_tile=128, num_partitions=None):
    """Pallas implementation of SoftHistogram.forward. Returns shape (bins,)."""
    delta = float(vmax - vmin) / float(bins)
    half_sigma = 0.5 * float(sigma)

    # Output rows padded to a sublane multiple so the out block is always aligned
    # (never disables the multi-core partition); edge slab needs bins_pad+1 usable rows.
    bins_pad = ((bins + 7) // 8) * 8
    epad = ((max(bins + 1, bins_pad + 1) + 7) // 8) * 8
    assert bins_pad + 1 <= epad

    # bins+1 shared bin edges e_k = vmin + delta*k (centers +- delta/2 collapse onto these),
    # pre-scaled by sigma/2, padded along sublanes with a harmless sentinel.
    sentinel = float(vmax) + 1000.0 * delta + 64.0 / max(float(sigma), 1e-6)
    edges = float(vmin) + delta * jnp.arange(bins + 1, dtype=jnp.float32)
    edges = jnp.concatenate(
        [edges, jnp.full((epad - (bins + 1),), sentinel, jnp.float32)])
    edges_b = jnp.broadcast_to((half_sigma * edges)[:, None], (epad, chunk))

    x_flat = x.reshape(-1).astype(jnp.float32)
    n = x_flat.shape[0]

    # Tiling: balanced ceil-split so sentinel padding stays small; optional TC partition.
    chunks_total = -(-n // chunk)
    if num_partitions is None:
        num_partitions = _default_num_partitions()
    p = max(1, min(int(num_partitions), chunks_total))

    chunks_per_core = -(-chunks_total // p)
    tiles_per_p = -(-chunks_per_core // int(max_chunks_per_tile))
    chunks_per_tile = -(-chunks_per_core // tiles_per_p)  # balanced -> minimal padding
    tile = chunks_per_tile * chunk
    num_tiles = p * tiles_per_p
    padded = num_tiles * tile

    # Unroll policy: full unroll for short fixed trip counts, otherwise 4x/2x.
    if chunks_per_tile <= 16:
        unroll = True
    elif chunks_per_tile % 4 == 0:
        unroll = 4
    elif chunks_per_tile % 2 == 0:
        unroll = 2
    else:
        unroll = 1

    # Sentinel padding: tanh saturates to exactly 1.0 at every real edge -> contribution
    # cancels exactly in the adjacent-edge difference.
    x_pad = jnp.pad(x_flat, (0, padded - n), constant_values=sentinel)
    x_pad = x_pad.reshape(num_tiles, tile)

    kernel = functools.partial(
        _soft_hist_kernel, half_sigma=half_sigma, bins_pad=bins_pad, chunk=chunk,
        chunks_per_tile=chunks_per_tile, unroll=unroll)

    out = pl.pallas_call(
        kernel,
        out_shape=jax.ShapeDtypeStruct((p * bins_pad, chunk), jnp.float32),
        grid_spec=pltpu.PrefetchScalarGridSpec(
            num_scalar_prefetch=0,
            grid=(p, tiles_per_p),
            in_specs=[
                pl.BlockSpec((1, tile), lambda pi, i: (pi * tiles_per_p + i, 0)),
                pl.BlockSpec((epad, chunk), lambda pi, i: (0, 0)),  # resident edges
            ],
            out_specs=pl.BlockSpec((bins_pad, chunk), lambda pi, i: (pi, 0)),
        ),
        compiler_params=pltpu.CompilerParams(
            dimension_semantics=("parallel", "arbitrary")),
    )(x_pad, edges_b)

    # Final lane reduction over partitions + lanes, 0.5 factor from sigmoid->tanh identity.
    out = out.reshape(p, bins_pad, chunk)[:, :bins, :]
    return 0.5 * out.sum(axis=(0, 2))


def _soft_histogram_ref(x, *, bins, vmin, vmax, sigma):
    """Pure-JAX reference mirroring the PyTorch forward exactly."""
    delta = float(vmax - vmin) / float(bins)
    centers = float(vmin) + delta * (jnp.arange(bins, dtype=jnp.float32) + 0.5)
    xf = x.reshape(-1).astype(jnp.float32)
    d = xf[None, :] - centers[:, None]
    y = jax.nn.sigmoid(sigma * (d + delta / 2.0)) - jax.nn.sigmoid(
        sigma * (d - delta / 2.0))
    return y.sum(axis=1)


if __name__ == "__main__":
    # Module config (synthetic, deterministic).
    BINS = 64
    VMIN, VMAX = 0.0, 1.0
    SIGMA = 400.0

    key = jax.random.PRNGKey(0)
    # Typical usage: a flattened NCHW image tensor; here [2, 4, 16, 16].
    x = jax.random.uniform(key, (2, 4, 16, 16), dtype=jnp.float32,
                           minval=VMIN, maxval=VMAX)

    out = soft_histogram(x, bins=BINS, vmin=VMIN, vmax=VMAX, sigma=SIGMA)
    out = jax.block_until_ready(out)

    ref = _soft_histogram_ref(x, bins=BINS, vmin=VMIN, vmax=VMAX, sigma=SIGMA)
    np.testing.assert_allclose(np.asarray(out), np.asarray(ref),
                               rtol=1e-5, atol=5e-4)

    print("KERNEL_OK")
</pallas_src>

<mosaic_0001>
module attributes {stable_mosaic.version = 11 : i64} {
  func.func @_soft_hist_kernel(%arg0: i32, %arg1: i32, %arg2: memref<1x2048xf32, #tpu.memory_space<vmem>>, %arg3: memref<72x128xf32, #tpu.memory_space<vmem>>, %arg4: memref<64x128xf32, #tpu.memory_space<vmem>>) attributes {dimension_semantics = [#tpu.dimension_semantics<parallel>, #tpu.dimension_semantics<arbitrary>], iteration_bounds = array<i64: 1, 1>, scalar_prefetch = 0 : i64, scratch_operands = 0 : i64, tpu.core_type = #tpu.core_type<tc>, window_params = [{transform_indices = @transform_0, window_bounds = array<i64: 1, 2048>}, {pipeline_mode = #tpu.pipeline_mode<synchronous>, transform_indices = @transform_1, window_bounds = array<i64: 72, 128>}, {transform_indices = @transform_2, window_bounds = array<i64: 64, 128>}]} {
    %c0_i32 = arith.constant 0 : i32
    %0 = arith.cmpi eq, %arg1, %c0_i32 : i32
    %1 = arith.extui %0 : i1 to i32
    %c0_i32_0 = arith.constant 0 : i32
    %2 = arith.cmpi ne, %1, %c0_i32_0 : i32
    scf.if %2 {
      %cst_54 = arith.constant 0.000000e+00 : f32
      %171 = vector.broadcast %cst_54 : f32 to vector<64x128xf32>
      %c0_55 = arith.constant 0 : index
      %c0_56 = arith.constant 0 : index
      %172 = vector.load %arg4[%c0_55, %c0_56] : memref<64x128xf32, #tpu.memory_space<vmem>>, vector<64x128xf32>
      tpu.vector_store %arg4[%c0_55, %c0_56], %171 {strides = array<i32>} : memref<64x128xf32, #tpu.memory_space<vmem>>, vector<64x128xf32>,
    } else {
    }
    %c0 = arith.constant 0 : index
    %c0_1 = arith.constant 0 : index
    %3 = vector.load %arg3[%c0, %c0_1] : memref<72x128xf32, #tpu.memory_space<vmem>>, vector<72x128xf32>
    %cst = arith.constant 0.000000e+00 : f32
    %4 = vector.broadcast %cst : f32 to vector<72x128xf32>
    %c0_i32_2 = arith.constant 0 : i32
    %c128_i32 = arith.constant 128 : i32
    %5 = arith.muli %c0_i32_2, %c128_i32 : i32
    %6 = tpu.assume_multiple %5, 128 : i32
    %c0_3 = arith.constant 0 : index
    %7 = arith.index_cast %6 : i32 to index
    %8 = vector.load %arg2[%c0_3, %7] : memref<1x2048xf32, #tpu.memory_space<vmem>>, vector<1x128xf32>
    %cst_4 = arith.constant 2.000000e+02 : f32
    %9 = vector.broadcast %cst_4 : f32 to vector<1x128xf32>
    %10 = arith.mulf %8, %9 : vector<1x128xf32>
    %11 = vector.broadcast %10 : vector<1x128xf32> to vector<72x128xf32>
    %12 = arith.subf %11, %3 : vector<72x128xf32>
    %13 = math.tanh %12 : vector<72x128xf32>
    %14 = arith.addf %4, %13 : vector<72x128xf32>
    %c1_i32 = arith.constant 1 : i32
    %c128_i32_5 = arith.constant 128 : i32
    %15 = arith.muli %c1_i32, %c128_i32_5 : i32
    %16 = tpu.assume_multiple %15, 128 : i32
    %c0_6 = arith.constant 0 : index
    %17 = arith.index_cast %16 : i32 to index
    %18 = vector.load %arg2[%c0_6, %17] : memref<1x2048xf32, #tpu.memory_space<vmem>>, vector<1x128xf32>
    %cst_7 = arith.constant 2.000000e+02 : f32
    %19 = vector.broadcast %cst_7 : f32 to vector<1x128xf32>
    %20 = arith.mulf %18, %19 : vector<1x128xf32>
    %21 = vector.broadcast %20 : vector<1x128xf32> to vector<72x128xf32>
    %22 = arith.subf %21, %3 : vector<72x128xf32>
    %23 = math.tanh %22 : vector<72x128xf32>
    %24 = arith.addf %14, %23 : vector<72x128xf32>
    %c2_i32 = arith.constant 2 : i32
    %c128_i32_8 = arith.constant 128 : i32
    %25 = arith.muli %c2_i32, %c128_i32_8 : i32
    %26 = tpu.assume_multiple %25, 128 : i32
    %c0_9 = arith.constant 0 : index
    %27 = arith.index_cast %26 : i32 to index
    %28 = vector.load %arg2[%c0_9, %27] : memref<1x2048xf32, #tpu.memory_space<vmem>>, vector<1x128xf32>
    %cst_10 = arith.constant 2.000000e+02 : f32
    %29 = vector.broadcast %cst_10 : f32 to vector<1x128xf32>
    %30 = arith.mulf %28, %29 : vector<1x128xf32>
    %31 = vector.broadcast %30 : vector<1x128xf32> to vector<72x128xf32>
    %32 = arith.subf %31, %3 : vector<72x128xf32>
    %33 = math.tanh %32 : vector<72x128xf32>
    %34 = arith.addf %24, %33 : vector<72x128xf32>
    %c3_i32 = arith.constant 3 : i32
    %c128_i32_11 = arith.constant 128 : i32
    %35 = arith.muli %c3_i32, %c128_i32_11 : i32
    %36 = tpu.assume_multiple %35, 128 : i32
    %c0_12 = arith.constant 0 : index
    %37 = arith.index_cast %36 : i32 to index
    %38 = vector.load %arg2[%c0_12, %37] : memref<1x2048xf32, #tpu.memory_space<vmem>>, vector<1x128xf32>
    %cst_13 = arith.constant 2.000000e+02 : f32
    %39 = vector.broadcast %cst_13 : f32 to vector<1x128xf32>
    %40 = arith.mulf %38, %39 : vector<1x128xf32>
    %41 = vector.broadcast %40 : vector<1x128xf32> to vector<72x128xf32>
    %42 = arith.subf %41, %3 : vector<72x128xf32>
    %43 = math.tanh %42 : vector<72x128xf32>
    %44 = arith.addf %34, %43 : vector<72x128xf32>
    %c4_i32 = arith.constant 4 : i32
    %c128_i32_14 = arith.constant 128 : i32
    %45 = arith.muli %c4_i32, %c128_i32_14 : i32
    %46 = tpu.assume_multiple %45, 128 : i32
    %c0_15 = arith.constant 0 : index
    %47 = arith.index_cast %46 : i32 to index
    %48 = vector.load %arg2[%c0_15, %47] : memref<1x2048xf32, #tpu.memory_space<vmem>>, vector<1x128xf32>
    %cst_16 = arith.constant 2.000000e+02 : f32
    %49 = vector.broadcast %cst_16 : f32 to vector<1x128xf32>
    %50 = arith.mulf %48, %49 : vector<1x128xf32>
    %51 = vector.broadcast %50 : vector<1x128xf32> to vector<72x128xf32>
    %52 = arith.subf %51, %3 : vector<72x128xf32>
    %53 = math.tanh %52 : vector<72x128xf32>
    %54 = arith.addf %44, %53 : vector<72x128xf32>
    %c5_i32 = arith.constant 5 : i32
    %c128_i32_17 = arith.constant 128 : i32
    %55 = arith.muli %c5_i32, %c128_i32_17 : i32
    %56 = tpu.assume_multiple %55, 128 : i32
    %c0_18 = arith.constant 0 : index
    %57 = arith.index_cast %56 : i32 to index
    %58 = vector.load %arg2[%c0_18, %57] : memref<1x2048xf32, #tpu.memory_space<vmem>>, vector<1x128xf32>
    %cst_19 = arith.constant 2.000000e+02 : f32
    %59 = vector.broadcast %cst_19 : f32 to vector<1x128xf32>
    %60 = arith.mulf %58, %59 : vector<1x128xf32>
    %61 = vector.broadcast %60 : vector<1x128xf32> to vector<72x128xf32>
    %62 = arith.subf %61, %3 : vector<72x128xf32>
    %63 = math.tanh %62 : vector<72x128xf32>
    %64 = arith.addf %54, %63 : vector<72x128xf32>
    %c6_i32 = arith.constant 6 : i32
    %c128_i32_20 = arith.constant 128 : i32
    %65 = arith.muli %c6_i32, %c128_i32_20 : i32
    %66 = tpu.assume_multiple %65, 128 : i32
    %c0_21 = arith.constant 0 : index
    %67 = arith.index_cast %66 : i32 to index
    %68 = vector.load %arg2[%c0_21, %67] : memref<1x2048xf32, #tpu.memory_space<vmem>>, vector<1x128xf32>
    %cst_22 = arith.constant 2.000000e+02 : f32
    %69 = vector.broadcast %cst_22 : f32 to vector<1x128xf32>
    %70 = arith.mulf %68, %69 : vector<1x128xf32>
    %71 = vector.broadcast %70 : vector<1x128xf32> to vector<72x128xf32>
    %72 = arith.subf %71, %3 : vector<72x128xf32>
    %73 = math.tanh %72 : vector<72x128xf32>
    %74 = arith.addf %64, %73 : vector<72x128xf32>
    %c7_i32 = arith.constant 7 : i32
    %c128_i32_23 = arith.constant 128 : i32
    %75 = arith.muli %c7_i32, %c128_i32_23 : i32
    %76 = tpu.assume_multiple %75, 128 : i32
    %c0_24 = arith.constant 0 : index
    %77 = arith.index_cast %76 : i32 to index
    %78 = vector.load %arg2[%c0_24, %77] : memref<1x2048xf32, #tpu.memory_space<vmem>>, vector<1x128xf32>
    %cst_25 = arith.constant 2.000000e+02 : f32
    %79 = vector.broadcast %cst_25 : f32 to vector<1x128xf32>
    %80 = arith.mulf %78, %79 : vector<1x128xf32>
    %81 = vector.broadcast %80 : vector<1x128xf32> to vector<72x128xf32>
    %82 = arith.subf %81, %3 : vector<72x128xf32>
    %83 = math.tanh %82 : vector<72x128xf32>
    %84 = arith.addf %74, %83 : vector<72x128xf32>
    %c8_i32 = arith.constant 8 : i32
    %c128_i32_26 = arith.constant 128 : i32
    %85 = arith.muli %c8_i32, %c128_i32_26 : i32
    %86 = tpu.assume_multiple %85, 128 : i32
    %c0_27 = arith.constant 0 : index
    %87 = arith.index_cast %86 : i32 to index
    %88 = vector.load %arg2[%c0_27, %87] : memref<1x2048xf32, #tpu.memory_space<vmem>>, vector<1x128xf32>
    %cst_28 = arith.constant 2.000000e+02 : f32
    %89 = vector.broadcast %cst_28 : f32 to vector<1x128xf32>
    %90 = arith.mulf %88, %89 : vector<1x128xf32>
    %91 = vector.broadcast %90 : vector<1x128xf32> to vector<72x128xf32>
    %92 = arith.subf %91, %3 : vector<72x128xf32>
    %93 = math.tanh %92 : vector<72x128xf32>
    %94 = arith.addf %84, %93 : vector<72x128xf32>
    %c9_i32 = arith.constant 9 : i32
    %c128_i32_29 = arith.constant 128 : i32
    %95 = arith.muli %c9_i32, %c128_i32_29 : i32
    %96 = tpu.assume_multiple %95, 128 : i32
    %c0_30 = arith.constant 0 : index
    %97 = arith.index_cast %96 : i32 to index
    %98 = vector.load %arg2[%c0_30, %97] : memref<1x2048xf32, #tpu.memory_space<vmem>>, vector<1x128xf32>
    %cst_31 = arith.constant 2.000000e+02 : f32
    %99 = vector.broadcast %cst_31 : f32 to vector<1x128xf32>
    %100 = arith.mulf %98, %99 : vector<1x128xf32>
    %101 = vector.broadcast %100 : vector<1x128xf32> to vector<72x128xf32>
    %102 = arith.subf %101, %3 : vector<72x128xf32>
    %103 = math.tanh %102 : vector<72x128xf32>
    %104 = arith.addf %94, %103 : vector<72x128xf32>
    %c10_i32 = arith.constant 10 : i32
    %c128_i32_32 = arith.constant 128 : i32
    %105 = arith.muli %c10_i32, %c128_i32_32 : i32
    %106 = tpu.assume_multiple %105, 128 : i32
    %c0_33 = arith.constant 0 : index
    %107 = arith.index_cast %106 : i32 to index
    %108 = vector.load %arg2[%c0_33, %107] : memref<1x2048xf32, #tpu.memory_space<vmem>>, vector<1x128xf32>
    %cst_34 = arith.constant 2.000000e+02 : f32
    %109 = vector.broadcast %cst_34 : f32 to vector<1x128xf32>
    %110 = arith.mulf %108, %109 : vector<1x128xf32>
    %111 = vector.broadcast %110 : vector<1x128xf32> to vector<72x128xf32>
    %112 = arith.subf %111, %3 : vector<72x128xf32>
    %113 = math.tanh %112 : vector<72x128xf32>
    %114 = arith.addf %104, %113 : vector<72x128xf32>
    %c11_i32 = arith.constant 11 : i32
    %c128_i32_35 = arith.constant 128 : i32
    %115 = arith.muli %c11_i32, %c128_i32_35 : i32
    %116 = tpu.assume_multiple %115, 128 : i32
    %c0_36 = arith.constant 0 : index
    %117 = arith.index_cast %116 : i32 to index
    %118 = vector.load %arg2[%c0_36, %117] : memref<1x2048xf32, #tpu.memory_space<vmem>>, vector<1x128xf32>
    %cst_37 = arith.constant 2.000000e+02 : f32
    %119 = vector.broadcast %cst_37 : f32 to vector<1x128xf32>
    %120 = arith.mulf %118, %119 : vector<1x128xf32>
    %121 = vector.broadcast %120 : vector<1x128xf32> to vector<72x128xf32>
    %122 = arith.subf %121, %3 : vector<72x128xf32>
    %123 = math.tanh %122 : vector<72x128xf32>
    %124 = arith.addf %114, %123 : vector<72x128xf32>
    %c12_i32 = arith.constant 12 : i32
    %c128_i32_38 = arith.constant 128 : i32
    %125 = arith.muli %c12_i32, %c128_i32_38 : i32
    %126 = tpu.assume_multiple %125, 128 : i32
    %c0_39 = arith.constant 0 : index
    %127 = arith.index_cast %126 : i32 to index
    %128 = vector.load %arg2[%c0_39, %127] : memref<1x2048xf32, #tpu.memory_space<vmem>>, vector<1x128xf32>
    %cst_40 = arith.constant 2.000000e+02 : f32
    %129 = vector.broadcast %cst_40 : f32 to vector<1x128xf32>
    %130 = arith.mulf %128, %129 : vector<1x128xf32>
    %131 = vector.broadcast %130 : vector<1x128xf32> to vector<72x128xf32>
    %132 = arith.subf %131, %3 : vector<72x128xf32>
    %133 = math.tanh %132 : vector<72x128xf32>
    %134 = arith.addf %124, %133 : vector<72x128xf32>
    %c13_i32 = arith.constant 13 : i32
    %c128_i32_41 = arith.constant 128 : i32
    %135 = arith.muli %c13_i32, %c128_i32_41 : i32
    %136 = tpu.assume_multiple %135, 128 : i32
    %c0_42 = arith.constant 0 : index
    %137 = arith.index_cast %136 : i32 to index
    %138 = vector.load %arg2[%c0_42, %137] : memref<1x2048xf32, #tpu.memory_space<vmem>>, vector<1x128xf32>
    %cst_43 = arith.constant 2.000000e+02 : f32
    %139 = vector.broadcast %cst_43 : f32 to vector<1x128xf32>
    %140 = arith.mulf %138, %139 : vector<1x128xf32>
    %141 = vector.broadcast %140 : vector<1x128xf32> to vector<72x128xf32>
    %142 = arith.subf %141, %3 : vector<72x128xf32>
    %143 = math.tanh %142 : vector<72x128xf32>
    %144 = arith.addf %134, %143 : vector<72x128xf32>
    %c14_i32 = arith.constant 14 : i32
    %c128_i32_44 = arith.constant 128 : i32
    %145 = arith.muli %c14_i32, %c128_i32_44 : i32
    %146 = tpu.assume_multiple %145, 128 : i32
    %c0_45 = arith.constant 0 : index
    %147 = arith.index_cast %146 : i32 to index
    %148 = vector.load %arg2[%c0_45, %147] : memref<1x2048xf32, #tpu.memory_space<vmem>>, vector<1x128xf32>
    %cst_46 = arith.constant 2.000000e+02 : f32
    %149 = vector.broadcast %cst_46 : f32 to vector<1x128xf32>
    %150 = arith.mulf %148, %149 : vector<1x128xf32>
    %151 = vector.broadcast %150 : vector<1x128xf32> to vector<72x128xf32>
    %152 = arith.subf %151, %3 : vector<72x128xf32>
    %153 = math.tanh %152 : vector<72x128xf32>
    %154 = arith.addf %144, %153 : vector<72x128xf32>
    %c15_i32 = arith.constant 15 : i32
    %c128_i32_47 = arith.constant 128 : i32
    %155 = arith.muli %c15_i32, %c128_i32_47 : i32
    %156 = tpu.assume_multiple %155, 128 : i32
    %c0_48 = arith.constant 0 : index
    %157 = arith.index_cast %156 : i32 to index
    %158 = vector.load %arg2[%c0_48, %157] : memref<1x2048xf32, #tpu.memory_space<vmem>>, vector<1x128xf32>
    %cst_49 = arith.constant 2.000000e+02 : f32
    %159 = vector.broadcast %cst_49 : f32 to vector<1x128xf32>
    %160 = arith.mulf %158, %159 : vector<1x128xf32>
    %161 = vector.broadcast %160 : vector<1x128xf32> to vector<72x128xf32>
    %162 = arith.subf %161, %3 : vector<72x128xf32>
    %163 = math.tanh %162 : vector<72x128xf32>
    %164 = arith.addf %154, %163 : vector<72x128xf32>
    %c16_i32 = arith.constant 16 : i32
    %c0_50 = arith.constant 0 : index
    %c0_51 = arith.constant 0 : index
    %165 = vector.load %arg4[%c0_50, %c0_51] : memref<64x128xf32, #tpu.memory_space<vmem>>, vector<64x128xf32>
    %166 = vector.extract_strided_slice %164 {offsets = [0, 0], sizes = [64, 128], strides = [1, 1]} : vector<72x128xf32> to vector<64x128xf32>
    %167 = vector.extract_strided_slice %164 {offsets = [1, 0], sizes = [64, 128], strides = [1, 1]} : vector<72x128xf32> to vector<64x128xf32>
    %168 = arith.subf %166, %167 : vector<64x128xf32>
    %169 = arith.addf %165, %168 : vector<64x128xf32>
    %c0_52 = arith.constant 0 : index
    %c0_53 = arith.constant 0 : index
    %170 = vector.load %arg4[%c0_52, %c0_53] : memref<64x128xf32, #tpu.memory_space<vmem>>, vector<64x128xf32>
    tpu.vector_store %arg4[%c0_52, %c0_53], %169 {strides = array<i32>} : memref<64x128xf32, #tpu.memory_space<vmem>>, vector<64x128xf32>,
    return
  }
  func.func @transform_0(%arg0: i32, %arg1: i32) -> (i32, i32) {
    %c1_i32 = arith.constant 1 : i32
    %0 = arith.muli %arg0, %c1_i32 : i32
    %1 = arith.addi %0, %arg1 : i32
    %c0_i32 = arith.constant 0 : i32
    %c0_i32_0 = arith.constant 0 : i32
    return %1, %c0_i32 : i32, i32
  }
  func.func @transform_1(%arg0: i32, %arg1: i32) -> (i32, i32) {
    %c0_i32 = arith.constant 0 : i32
    %c0_i32_0 = arith.constant 0 : i32
    %c0_i32_1 = arith.constant 0 : i32
    return %c0_i32, %c0_i32_0 : i32, i32
  }
  func.func @transform_2(%arg0: i32, %arg1: i32) -> (i32, i32) {
    %c0_i32 = arith.constant 0 : i32
    %c0_i32_0 = arith.constant 0 : i32
    return %arg0, %c0_i32 : i32, i32
  }
}

</mosaic_0001>

<llo_original>
// kernel: tpu_custom_call.1
$region0: #{tpu_custom_call.1}
  #allocation0 [shape = 'u32[]', space=smem, size = 0x4, offset = 0x4, fixed_abs, tag = 'smem constant byte address 0x4 - core index']
  #allocation1 [shape = 'u32[144,128]{1,0:T(1,128)}', space=vmem, size = 0x12000, scoped, tag = 'internal scratch']
  %s0 = inlined_call_operand.hbm [shape: f32[1,2048], index: 0, kind: input, shape index: {}]
  %s1 = inlined_call_operand.hbm [shape: f32[72,128], index: 1, kind: input, shape index: {}]
  %s2 = inlined_call_operand.hbm [shape: f32[64,128], index: 2, kind: output, shape index: {}]
  %s3 = sld [smem:[#allocation0]]
  $region30: #{tpu_custom_call.1} parent=0
    _
  %s5 = ssub.s32 1, %s3
  %s6 = scalar_select 0, %s5, %s3
  $region1: #{tpu_custom_call.1} parent=0
    #allocation2 [shape = 'u8[8192]{0}', space=vmem, size = 0x2000, scoped, tag = 'input window, operand 0, single buffered']
    #allocation3 [shape = 's32[1]{0}', space=sflag, size = 0x4, scoped, tag = 'scoped memory for tpu_custom_call.1']
    #allocation4 [shape = 's32[1]{0}', space=sflag, size = 0x4, scoped, tag = 'scoped memory for tpu_custom_call.1']
    #allocation5 [shape = 'u8[36864]{0}', space=vmem, size = 0x9000, scoped, tag = 'input window, operand 1, single buffered']
    #allocation6 [shape = 's32[1]{0}', space=sflag, size = 0x4, scoped, tag = 'scoped memory for tpu_custom_call.1']
    #allocation7 [shape = 'u8[32768]{0}', space=vmem, size = 0x8000, scoped, tag = 'output window, operand 0, single buffered']
    %7 = vsyncpa [#allocation3], 0
    %8 = vsyncpa [#allocation6], 0
    %9 = vsyncpa [#allocation4], 0
    // Predicated region
    $region2: #{tpu_custom_call.1} parent=1 // pred_check
      _
    $region3: #{tpu_custom_call.1} parent=1 // pred_check_branch
      %11 = sbr.rel (0) target = $region5
    $region4: #{tpu_custom_call.1} parent=1 // pred_region
      %s12 = sadd.s32 0, 0
      %s14 = ssub.s32 256, 256
      %15 = vsyncadd [#allocation3], %s14
      %s16 = smul.addr %s12, 16
      %s17 = smul.addr %s16, 16
      %s18 = scalar_lea.hbm %s0, %s17
      %s20 = sshll.u32 [#allocation2], 4
      %s21 = int_to_ptr.vmem [resolvable:$true] %s20
      %23 = dma.hbm_to_vmem [thread:$0]  %s18, 256, %s21, [#allocation3]
    $region5: #{tpu_custom_call.1} parent=1 // pred_fallthru
      _
    // Predicated region
    $region6: #{tpu_custom_call.1} parent=1 // pred_check
      _
    $region7: #{tpu_custom_call.1} parent=1 // pred_check_branch
      %25 = sbr.rel (0) target = $region9
    $region8: #{tpu_custom_call.1} parent=1 // pred_region
      %s27 = ssub.s32 1152, 1152
      %28 = vsyncadd [#allocation6], %s27
      %s29 = sshll.u32 [#allocation5], 4
      %s30 = int_to_ptr.vmem [resolvable:$true] %s29
      %35 = dma.hbm_to_vmem [thread:$0]  %s1, 1152, %s30, [#allocation6], 128, 128, 8
    $region9: #{tpu_custom_call.1} parent=1 // pred_fallthru
      _
    // Predicated region
    $region10: #{tpu_custom_call.1} parent=1 // pred_check
      _
    $region11: #{tpu_custom_call.1} parent=1 // pred_check_branch
      %37 = sbr.rel (0) target = $region13
    $region12: #{tpu_custom_call.1} parent=1 // pred_region
      %38 = dma.done [#allocation3], 256
    $region13: #{tpu_custom_call.1} parent=1 // pred_fallthru
      _
    // Predicated region
    $region14: #{tpu_custom_call.1} parent=1 // pred_check
      _
    $region15: #{tpu_custom_call.1} parent=1 // pred_check_branch
      %40 = sbr.rel (0) target = $region17
    $region16: #{tpu_custom_call.1} parent=1 // pred_region
      %41 = dma.done [#allocation6], 1152
    $region17: #{tpu_custom_call.1} parent=1 // pred_fallthru
      _
    %s42 = sadd.s32 0, 0
    %p43 = scmp.eq.s32.totalorder 0, 0
    // Predicated region
    $region18: #{tpu_custom_call.1} parent=1 // pred_check
      %p44 = pneg %p43
    $region19: #{tpu_custom_call.1} parent=1 // pred_check_branch
      %46 = sbr.rel (%p44) target = $region21
    $region20: #{tpu_custom_call.1} parent=1 // pred_region
      %47 = vst [vmem:[#allocation7] sm:$0xff] 0.0
      %48 = vst [vmem:[#allocation7 + $0x8] sm:$0xff] 0.0
      %49 = vst [vmem:[#allocation7 + $0x10] sm:$0xff] 0.0
      %50 = vst [vmem:[#allocation7 + $0x18] sm:$0xff] 0.0
      %51 = vst [vmem:[#allocation7 + $0x20] sm:$0xff] 0.0
      %52 = vst [vmem:[#allocation7 + $0x28] sm:$0xff] 0.0
      %53 = vst [vmem:[#allocation7 + $0x30] sm:$0xff] 0.0
      %54 = vst [vmem:[#allocation7 + $0x38] sm:$0xff] 0.0
    $region21: #{tpu_custom_call.1} parent=1 // pred_fallthru
      _
    %v55 = vld [vmem:[#allocation5] sm:$0xff]
    %v56 = vld [vmem:[#allocation5 + $0x8] sm:$0xff]
    %v57 = vld [vmem:[#allocation5 + $0x10] sm:$0xff]
    %v58 = vld [vmem:[#allocation5 + $0x18] sm:$0xff]
    %v59 = vld [vmem:[#allocation5 + $0x20] sm:$0xff]
    %v60 = vld [vmem:[#allocation5 + $0x28] sm:$0xff]
    %v61 = vld [vmem:[#allocation5 + $0x30] sm:$0xff]
    %v62 = vld [vmem:[#allocation5 + $0x38] sm:$0xff]
    %v63 = vld [vmem:[#allocation5 + $0x40] sm:$0xff]
    %v64 = vld [vmem:[#allocation2] sm:$0x1]
    %v65 = vmul.f32 %v64, 200.0
    %v67 = vlaneseq
    %v68 = vshrl.u32 %v67, 7
    %v69 = vsub.s32 0, %v68
    %v70 = vrot.slane %v65, %v69
    %v72 = vsub.f32 %v70, %v55
    %v73 = vsub.f32 %v70, %v56
    %v74 = vsub.f32 %v70, %v57
    %v75 = vsub.f32 %v70, %v58
    %v76 = vsub.f32 %v70, %v59
    %v77 = vsub.f32 %v70, %v60
    %v78 = vsub.f32 %v70, %v61
    %v79 = vsub.f32 %v70, %v62
    %v80 = vsub.f32 %v70, %v63
    %v81 = vtanh.pop %v72
    %v82 = vtanh.pop %v73
    %v83 = vtanh.pop %v74
    %v84 = vtanh.pop %v75
    %v85 = vtanh.pop %v76
    %v86 = vtanh.pop %v77
    %v87 = vtanh.pop %v78
    %v88 = vtanh.pop %v79
    %v89 = vtanh.pop %v80
    %v90 = vadd.f32 %v81, 0.0
    %v91 = vadd.f32 %v82, 0.0
    %v92 = vadd.f32 %v83, 0.0
    %v93 = vadd.f32 %v84, 0.0
    %v94 = vadd.f32 %v85, 0.0
    %v95 = vadd.f32 %v86, 0.0
    %v96 = vadd.f32 %v87, 0.0
    %v97 = vadd.f32 %v88, 0.0
    %v98 = vadd.f32 %v89, 0.0
    %s99 = scalar_lea.vmem [#allocation2], 1
    %v100 = vld [vmem:[%s99] sm:$0x1]
    %v101 = vmul.f32 %v100, 200.0
    %v103 = vlaneseq
    %v104 = vshrl.u32 %v103, 7
    %v105 = vsub.s32 0, %v104
    %v106 = vrot.slane %v101, %v105
    %v108 = vsub.f32 %v106, %v55
    %v109 = vsub.f32 %v106, %v56
    %v110 = vsub.f32 %v106, %v57
    %v111 = vsub.f32 %v106, %v58
    %v112 = vsub.f32 %v106, %v59
    %v113 = vsub.f32 %v106, %v60
    %v114 = vsub.f32 %v106, %v61
    %v115 = vsub.f32 %v106, %v62
    %v116 = vsub.f32 %v106, %v63
    %v117 = vtanh.pop %v108
    %v118 = vtanh.pop %v109
    %v119 = vtanh.pop %v110
    %v120 = vtanh.pop %v111
    %v121 = vtanh.pop %v112
    %v122 = vtanh.pop %v113
    %v123 = vtanh.pop %v114
    %v124 = vtanh.pop %v115
    %v125 = vtanh.pop %v116
    %v126 = vadd.f32 %v90, %v117
    %v127 = vadd.f32 %v91, %v118
    %v128 = vadd.f32 %v92, %v119
    %v129 = vadd.f32 %v93, %v120
    %v130 = vadd.f32 %v94, %v121
    %v131 = vadd.f32 %v95, %v122
    %v132 = vadd.f32 %v96, %v123
    %v133 = vadd.f32 %v97, %v124
    %v134 = vadd.f32 %v98, %v125
    %s135 = scalar_lea.vmem [#allocation2], 2
    %v136 = vld [vmem:[%s135] sm:$0x1]
    %v137 = vmul.f32 %v136, 200.0
    %v139 = vlaneseq
    %v140 = vshrl.u32 %v139, 7
    %v141 = vsub.s32 0, %v140
    %v142 = vrot.slane %v137, %v141
    %v144 = vsub.f32 %v142, %v55
    %v145 = vsub.f32 %v142, %v56
    %v146 = vsub.f32 %v142, %v57
    %v147 = vsub.f32 %v142, %v58
    %v148 = vsub.f32 %v142, %v59
    %v149 = vsub.f32 %v142, %v60
    %v150 = vsub.f32 %v142, %v61
    %v151 = vsub.f32 %v142, %v62
    %v152 = vsub.f32 %v142, %v63
    %v153 = vtanh.pop %v144
    %v154 = vtanh.pop %v145
    %v155 = vtanh.pop %v146
    %v156 = vtanh.pop %v147
    %v157 = vtanh.pop %v148
    %v158 = vtanh.pop %v149
    %v159 = vtanh.pop %v150
    %v160 = vtanh.pop %v151
    %v161 = vtanh.pop %v152
    %v162 = vadd.f32 %v126, %v153
    %v163 = vadd.f32 %v127, %v154
    %v164 = vadd.f32 %v128, %v155
    %v165 = vadd.f32 %v129, %v156
    %v166 = vadd.f32 %v130, %v157
    %v167 = vadd.f32 %v131, %v158
    %v168 = vadd.f32 %v132, %v159
    %v169 = vadd.f32 %v133, %v160
    %v170 = vadd.f32 %v134, %v161
    %s171 = scalar_lea.vmem [#allocation2], 3
    %v172 = vld [vmem:[%s171] sm:$0x1]
    %v173 = vmul.f32 %v172, 200.0
    %v175 = vlaneseq
    %v176 = vshrl.u32 %v175, 7
    %v177 = vsub.s32 0, %v176
    %v178 = vrot.slane %v173, %v177
    %v180 = vsub.f32 %v178, %v55
    %v181 = vsub.f32 %v178, %v56
    %v182 = vsub.f32 %v178, %v57
    %v183 = vsub.f32 %v178, %v58
    %v184 = vsub.f32 %v178, %v59
    %v185 = vsub.f32 %v178, %v60
    %v186 = vsub.f32 %v178, %v61
    %v187 = vsub.f32 %v178, %v62
    %v188 = vsub.f32 %v178, %v63
    %v189 = vtanh.pop %v180
    %v190 = vtanh.pop %v181
    %v191 = vtanh.pop %v182
    %v192 = vtanh.pop %v183
    %v193 = vtanh.pop %v184
    %v194 = vtanh.pop %v185
    %v195 = vtanh.pop %v186
    %v196 = vtanh.pop %v187
    %v197 = vtanh.pop %v188
    %v198 = vadd.f32 %v162, %v189
    %v199 = vadd.f32 %v163, %v190
    %v200 = vadd.f32 %v164, %v191
    %v201 = vadd.f32 %v165, %v192
    %v202 = vadd.f32 %v166, %v193
    %v203 = vadd.f32 %v167, %v194
    %v204 = vadd.f32 %v168, %v195
    %v205 = vadd.f32 %v169, %v196
    %v206 = vadd.f32 %v170, %v197
    %s207 = scalar_lea.vmem [#allocation2], 4
    %v208 = vld [vmem:[%s207] sm:$0x1]
    %v209 = vmul.f32 %v208, 200.0
    %v211 = vlaneseq
    %v212 = vshrl.u32 %v211, 7
    %v213 = vsub.s32 0, %v212
    %v214 = vrot.slane %v209, %v213
    %v216 = vsub.f32 %v214, %v55
    %v217 = vsub.f32 %v214, %v56
    %v218 = vsub.f32 %v214, %v57
    %v219 = vsub.f32 %v214, %v58
    %v220 = vsub.f32 %v214, %v59
    %v221 = vsub.f32 %v214, %v60
    %v222 = vsub.f32 %v214, %v61
    %v223 = vsub.f32 %v214, %v62
    %v224 = vsub.f32 %v214, %v63
    %v225 = vtanh.pop %v216
    %v226 = vtanh.pop %v217
    %v227 = vtanh.pop %v218
    %v228 = vtanh.pop %v219
    %v229 = vtanh.pop %v220
    %v230 = vtanh.pop %v221
    %v231 = vtanh.pop %v222
    %v232 = vtanh.pop %v223
    %v233 = vtanh.pop %v224
    %v234 = vadd.f32 %v198, %v225
    %v235 = vadd.f32 %v199, %v226
    %v236 = vadd.f32 %v200, %v227
    %v237 = vadd.f32 %v201, %v228
    %v238 = vadd.f32 %v202, %v229
    %v239 = vadd.f32 %v203, %v230
    %v240 = vadd.f32 %v204, %v231
    %v241 = vadd.f32 %v205, %v232
    %v242 = vadd.f32 %v206, %v233
    %s243 = scalar_lea.vmem [#allocation2], 5
    %v244 = vld [vmem:[%s243] sm:$0x1]
    %v245 = vmul.f32 %v244, 200.0
    %v247 = vlaneseq
    %v248 = vshrl.u32 %v247, 7
    %v249 = vsub.s32 0, %v248
    %v250 = vrot.slane %v245, %v249
    %v252 = vsub.f32 %v250, %v55
    %v253 = vsub.f32 %v250, %v56
    %v254 = vsub.f32 %v250, %v57
    %v255 = vsub.f32 %v250, %v58
    %v256 = vsub.f32 %v250, %v59
    %v257 = vsub.f32 %v250, %v60
    %v258 = vsub.f32 %v250, %v61
    %v259 = vsub.f32 %v250, %v62
    %v260 = vsub.f32 %v250, %v63
    %v261 = vtanh.pop %v252
    %v262 = vtanh.pop %v253
    %v263 = vtanh.pop %v254
    %v264 = vtanh.pop %v255
    %v265 = vtanh.pop %v256
    %v266 = vtanh.pop %v257
    %v267 = vtanh.pop %v258
    %v268 = vtanh.pop %v259
    %v269 = vtanh.pop %v260
    %v270 = vadd.f32 %v234, %v261
    %v271 = vadd.f32 %v235, %v262
    %v272 = vadd.f32 %v236, %v263
    %v273 = vadd.f32 %v237, %v264
    %v274 = vadd.f32 %v238, %v265
    %v275 = vadd.f32 %v239, %v266
    %v276 = vadd.f32 %v240, %v267
    %v277 = vadd.f32 %v241, %v268
    %v278 = vadd.f32 %v242, %v269
    %s279 = scalar_lea.vmem [#allocation2], 6
    %v280 = vld [vmem:[%s279] sm:$0x1]
    %v281 = vmul.f32 %v280, 200.0
    %v283 = vlaneseq
    %v284 = vshrl.u32 %v283, 7
    %v285 = vsub.s32 0, %v284
    %v286 = vrot.slane %v281, %v285
    %v288 = vsub.f32 %v286, %v55
    %v289 = vsub.f32 %v286, %v56
    %v290 = vsub.f32 %v286, %v57
    %v291 = vsub.f32 %v286, %v58
    %v292 = vsub.f32 %v286, %v59
    %v293 = vsub.f32 %v286, %v60
    %v294 = vsub.f32 %v286, %v61
    %v295 = vsub.f32 %v286, %v62
    %v296 = vsub.f32 %v286, %v63
    %v297 = vtanh.pop %v288
    %v298 = vtanh.pop %v289
    %v299 = vtanh.pop %v290
    %v300 = vtanh.pop %v291
    %v301 = vtanh.pop %v292
    %v302 = vtanh.pop %v293
    %v303 = vtanh.pop %v294
    %v304 = vtanh.pop %v295
    %v305 = vtanh.pop %v296
    %v306 = vadd.f32 %v270, %v297
    %v307 = vadd.f32 %v271, %v298
    %v308 = vadd.f32 %v272, %v299
    %v309 = vadd.f32 %v273, %v300
    %v310 = vadd.f32 %v274, %v301
    %v311 = vadd.f32 %v275, %v302
    %v312 = vadd.f32 %v276, %v303
    %v313 = vadd.f32 %v277, %v304
    %v314 = vadd.f32 %v278, %v305
    %s315 = scalar_lea.vmem [#allocation2], 7
    %v316 = vld [vmem:[%s315] sm:$0x1]
    %v317 = vmul.f32 %v316, 200.0
    %v319 = vlaneseq
    %v320 = vshrl.u32 %v319, 7
    %v321 = vsub.s32 0, %v320
    %v322 = vrot.slane %v317, %v321
    %v324 = vsub.f32 %v322, %v55
    %v325 = vsub.f32 %v322, %v56
    %v326 = vsub.f32 %v322, %v57
    %v327 = vsub.f32 %v322, %v58
    %v328 = vsub.f32 %v322, %v59
    %v329 = vsub.f32 %v322, %v60
    %v330 = vsub.f32 %v322, %v61
    %v331 = vsub.f32 %v322, %v62
    %v332 = vsub.f32 %v322, %v63
    %v333 = vtanh.pop %v324
    %v334 = vtanh.pop %v325
    %v335 = vtanh.pop %v326
    %v336 = vtanh.pop %v327
    %v337 = vtanh.pop %v328
    %v338 = vtanh.pop %v329
    %v339 = vtanh.pop %v330
    %v340 = vtanh.pop %v331
    %v341 = vtanh.pop %v332
    %v342 = vadd.f32 %v306, %v333
    %v343 = vadd.f32 %v307, %v334
    %v344 = vadd.f32 %v308, %v335
    %v345 = vadd.f32 %v309, %v336
    %v346 = vadd.f32 %v310, %v337
    %v347 = vadd.f32 %v311, %v338
    %v348 = vadd.f32 %v312, %v339
    %v349 = vadd.f32 %v313, %v340
    %v350 = vadd.f32 %v314, %v341
    %s351 = scalar_lea.vmem [#allocation2], 8
    %v352 = vld [vmem:[%s351] sm:$0x1]
    %v353 = vmul.f32 %v352, 200.0
    %v355 = vlaneseq
    %v356 = vshrl.u32 %v355, 7
    %v357 = vsub.s32 0, %v356
    %v358 = vrot.slane %v353, %v357
    %v360 = vsub.f32 %v358, %v55
    %v361 = vsub.f32 %v358, %v56
    %v362 = vsub.f32 %v358, %v57
    %v363 = vsub.f32 %v358, %v58
    %v364 = vsub.f32 %v358, %v59
    %v365 = vsub.f32 %v358, %v60
    %v366 = vsub.f32 %v358, %v61
    %v367 = vsub.f32 %v358, %v62
    %v368 = vsub.f32 %v358, %v63
    %v369 = vtanh.pop %v360
    %v370 = vtanh.pop %v361
    %v371 = vtanh.pop %v362
    %v372 = vtanh.pop %v363
    %v373 = vtanh.pop %v364
    %v374 = vtanh.pop %v365
    %v375 = vtanh.pop %v366
    %v376 = vtanh.pop %v367
    %v377 = vtanh.pop %v368
    %v378 = vadd.f32 %v342, %v369
    %v379 = vadd.f32 %v343, %v370
    %v380 = vadd.f32 %v344, %v371
    %v381 = vadd.f32 %v345, %v372
    %v382 = vadd.f32 %v346, %v373
    %v383 = vadd.f32 %v347, %v374
    %v384 = vadd.f32 %v348, %v375
    %v385 = vadd.f32 %v349, %v376
    %v386 = vadd.f32 %v350, %v377
    %s387 = scalar_lea.vmem [#allocation2], 9
    %v388 = vld [vmem:[%s387] sm:$0x1]
    %v389 = vmul.f32 %v388, 200.0
    %v391 = vlaneseq
    %v392 = vshrl.u32 %v391, 7
    %v393 = vsub.s32 0, %v392
    %v394 = vrot.slane %v389, %v393
    %v396 = vsub.f32 %v394, %v55
    %v397 = vsub.f32 %v394, %v56
    %v398 = vsub.f32 %v394, %v57
    %v399 = vsub.f32 %v394, %v58
    %v400 = vsub.f32 %v394, %v59
    %v401 = vsub.f32 %v394, %v60
    %v402 = vsub.f32 %v394, %v61
    %v403 = vsub.f32 %v394, %v62
    %v404 = vsub.f32 %v394, %v63
    %v405 = vtanh.pop %v396
    %v406 = vtanh.pop %v397
    %v407 = vtanh.pop %v398
    %v408 = vtanh.pop %v399
    %v409 = vtanh.pop %v400
    %v410 = vtanh.pop %v401
    %v411 = vtanh.pop %v402
    %v412 = vtanh.pop %v403
    %v413 = vtanh.pop %v404
    %v414 = vadd.f32 %v378, %v405
    %v415 = vadd.f32 %v379, %v406
    %v416 = vadd.f32 %v380, %v407
    %v417 = vadd.f32 %v381, %v408
    %v418 = vadd.f32 %v382, %v409
    %v419 = vadd.f32 %v383, %v410
    %v420 = vadd.f32 %v384, %v411
    %v421 = vadd.f32 %v385, %v412
    %v422 = vadd.f32 %v386, %v413
    %s423 = scalar_lea.vmem [#allocation2], 10
    %v424 = vld [vmem:[%s423] sm:$0x1]
    %v425 = vmul.f32 %v424, 200.0
    %v427 = vlaneseq
    %v428 = vshrl.u32 %v427, 7
    %v429 = vsub.s32 0, %v428
    %v430 = vrot.slane %v425, %v429
    %v432 = vsub.f32 %v430, %v55
    %v433 = vsub.f32 %v430, %v56
    %v434 = vsub.f32 %v430, %v57
    %v435 = vsub.f32 %v430, %v58
    %v436 = vsub.f32 %v430, %v59
    %v437 = vsub.f32 %v430, %v60
    %v438 = vsub.f32 %v430, %v61
    %v439 = vsub.f32 %v430, %v62
    %v440 = vsub.f32 %v430, %v63
    %v441 = vtanh.pop %v432
    %v442 = vtanh.pop %v433
    %v443 = vtanh.pop %v434
    %v444 = vtanh.pop %v435
    %v445 = vtanh.pop %v436
    %v446 = vtanh.pop %v437
    %v447 = vtanh.pop %v438
    %v448 = vtanh.pop %v439
    %v449 = vtanh.pop %v440
    %v450 = vadd.f32 %v414, %v441
    %v451 = vadd.f32 %v415, %v442
    %v452 = vadd.f32 %v416, %v443
    %v453 = vadd.f32 %v417, %v444
    %v454 = vadd.f32 %v418, %v445
    %v455 = vadd.f32 %v419, %v446
    %v456 = vadd.f32 %v420, %v447
    %v457 = vadd.f32 %v421, %v448
    %v458 = vadd.f32 %v422, %v449
    %s459 = scalar_lea.vmem [#allocation2], 11
    %v460 = vld [vmem:[%s459] sm:$0x1]
    %v461 = vmul.f32 %v460, 200.0
    %v463 = vlaneseq
    %v464 = vshrl.u32 %v463, 7
    %v465 = vsub.s32 0, %v464
    %v466 = vrot.slane %v461, %v465
    %v468 = vsub.f32 %v466, %v55
    %v469 = vsub.f32 %v466, %v56
    %v470 = vsub.f32 %v466, %v57
    %v471 = vsub.f32 %v466, %v58
    %v472 = vsub.f32 %v466, %v59
    %v473 = vsub.f32 %v466, %v60
    %v474 = vsub.f32 %v466, %v61
    %v475 = vsub.f32 %v466, %v62
    %v476 = vsub.f32 %v466, %v63
    %v477 = vtanh.pop %v468
    %v478 = vtanh.pop %v469
    %v479 = vtanh.pop %v470
    %v480 = vtanh.pop %v471
    %v481 = vtanh.pop %v472
    %v482 = vtanh.pop %v473
    %v483 = vtanh.pop %v474
    %v484 = vtanh.pop %v475
    %v485 = vtanh.pop %v476
    %v486 = vadd.f32 %v450, %v477
    %v487 = vadd.f32 %v451, %v478
    %v488 = vadd.f32 %v452, %v479
    %v489 = vadd.f32 %v453, %v480
    %v490 = vadd.f32 %v454, %v481
    %v491 = vadd.f32 %v455, %v482
    %v492 = vadd.f32 %v456, %v483
    %v493 = vadd.f32 %v457, %v484
    %v494 = vadd.f32 %v458, %v485
    %s495 = scalar_lea.vmem [#allocation2], 12
    %v496 = vld [vmem:[%s495] sm:$0x1]
    %v497 = vmul.f32 %v496, 200.0
    %v499 = vlaneseq
    %v500 = vshrl.u32 %v499, 7
    %v501 = vsub.s32 0, %v500
    %v502 = vrot.slane %v497, %v501
    %v504 = vsub.f32 %v502, %v55
    %v505 = vsub.f32 %v502, %v56
    %v506 = vsub.f32 %v502, %v57
    %v507 = vsub.f32 %v502, %v58
    %v508 = vsub.f32 %v502, %v59
    %v509 = vsub.f32 %v502, %v60
    %v510 = vsub.f32 %v502, %v61
    %v511 = vsub.f32 %v502, %v62
    %v512 = vsub.f32 %v502, %v63
    %v513 = vtanh.pop %v504
    %v514 = vtanh.pop %v505
    %v515 = vtanh.pop %v506
    %v516 = vtanh.pop %v507
    %v517 = vtanh.pop %v508
    %v518 = vtanh.pop %v509
    %v519 = vtanh.pop %v510
    %v520 = vtanh.pop %v511
    %v521 = vtanh.pop %v512
    %v522 = vadd.f32 %v486, %v513
    %v523 = vadd.f32 %v487, %v514
    %v524 = vadd.f32 %v488, %v515
    %v525 = vadd.f32 %v489, %v516
    %v526 = vadd.f32 %v490, %v517
    %v527 = vadd.f32 %v491, %v518
    %v528 = vadd.f32 %v492, %v519
    %v529 = vadd.f32 %v493, %v520
    %v530 = vadd.f32 %v494, %v521
    %s531 = scalar_lea.vmem [#allocation2], 13
    %v532 = vld [vmem:[%s531] sm:$0x1]
    %v533 = vmul.f32 %v532, 200.0
    %v535 = vlaneseq
    %v536 = vshrl.u32 %v535, 7
    %v537 = vsub.s32 0, %v536
    %v538 = vrot.slane %v533, %v537
    %v540 = vsub.f32 %v538, %v55
    %v541 = vsub.f32 %v538, %v56
    %v542 = vsub.f32 %v538, %v57
    %v543 = vsub.f32 %v538, %v58
    %v544 = vsub.f32 %v538, %v59
    %v545 = vsub.f32 %v538, %v60
    %v546 = vsub.f32 %v538, %v61
    %v547 = vsub.f32 %v538, %v62
    %v548 = vsub.f32 %v538, %v63
    %v549 = vtanh.pop %v540
    %v550 = vtanh.pop %v541
    %v551 = vtanh.pop %v542
    %v552 = vtanh.pop %v543
    %v553 = vtanh.pop %v544
    %v554 = vtanh.pop %v545
    %v555 = vtanh.pop %v546
    %v556 = vtanh.pop %v547
    %v557 = vtanh.pop %v548
    %v558 = vadd.f32 %v522, %v549
    %v559 = vadd.f32 %v523, %v550
    %v560 = vadd.f32 %v524, %v551
    %v561 = vadd.f32 %v525, %v552
    %v562 = vadd.f32 %v526, %v553
    %v563 = vadd.f32 %v527, %v554
    %v564 = vadd.f32 %v528, %v555
    %v565 = vadd.f32 %v529, %v556
    %v566 = vadd.f32 %v530, %v557
    %s567 = scalar_lea.vmem [#allocation2], 14
    %v568 = vld [vmem:[%s567] sm:$0x1]
    %v569 = vmul.f32 %v568, 200.0
    %v571 = vlaneseq
    %v572 = vshrl.u32 %v571, 7
    %v573 = vsub.s32 0, %v572
    %v574 = vrot.slane %v569, %v573
    %v576 = vsub.f32 %v574, %v55
    %v577 = vsub.f32 %v574, %v56
    %v578 = vsub.f32 %v574, %v57
    %v579 = vsub.f32 %v574, %v58
    %v580 = vsub.f32 %v574, %v59
    %v581 = vsub.f32 %v574, %v60
    %v582 = vsub.f32 %v574, %v61
    %v583 = vsub.f32 %v574, %v62
    %v584 = vsub.f32 %v574, %v63
    %v585 = vtanh.pop %v576
    %v586 = vtanh.pop %v577
    %v587 = vtanh.pop %v578
    %v588 = vtanh.pop %v579
    %v589 = vtanh.pop %v580
    %v590 = vtanh.pop %v581
    %v591 = vtanh.pop %v582
    %v592 = vtanh.pop %v583
    %v593 = vtanh.pop %v584
    %v594 = vadd.f32 %v558, %v585
    %v595 = vadd.f32 %v559, %v586
    %v596 = vadd.f32 %v560, %v587
    %v597 = vadd.f32 %v561, %v588
    %v598 = vadd.f32 %v562, %v589
    %v599 = vadd.f32 %v563, %v590
    %v600 = vadd.f32 %v564, %v591
    %v601 = vadd.f32 %v565, %v592
    %v602 = vadd.f32 %v566, %v593
    %s603 = scalar_lea.vmem [#allocation2], 15
    %v604 = vld [vmem:[%s603] sm:$0x1]
    %v605 = vmul.f32 %v604, 200.0
    %v607 = vlaneseq
    %v608 = vshrl.u32 %v607, 7
    %v609 = vsub.s32 0, %v608
    %v610 = vrot.slane %v605, %v609
    %v612 = vsub.f32 %v610, %v55
    %v613 = vsub.f32 %v610, %v56
    %v614 = vsub.f32 %v610, %v57
    %v615 = vsub.f32 %v610, %v58
    %v616 = vsub.f32 %v610, %v59
    %v617 = vsub.f32 %v610, %v60
    %v618 = vsub.f32 %v610, %v61
    %v619 = vsub.f32 %v610, %v62
    %v620 = vsub.f32 %v610, %v63
    %v621 = vtanh.pop %v612
    %v622 = vtanh.pop %v613
    %v623 = vtanh.pop %v614
    %v624 = vtanh.pop %v615
    %v625 = vtanh.pop %v616
    %v626 = vtanh.pop %v617
    %v627 = vtanh.pop %v618
    %v628 = vtanh.pop %v619
    %v629 = vtanh.pop %v620
    %v630 = vadd.f32 %v594, %v621
    %v631 = vadd.f32 %v595, %v622
    %v632 = vadd.f32 %v596, %v623
    %v633 = vadd.f32 %v597, %v624
    %v634 = vadd.f32 %v598, %v625
    %v635 = vadd.f32 %v599, %v626
    %v636 = vadd.f32 %v600, %v627
    %v637 = vadd.f32 %v601, %v628
    %v638 = vadd.f32 %v602, %v629
    %v639 = vld [vmem:[#allocation7] sm:$0xff]
    %v640 = vld [vmem:[#allocation7 + $0x8] sm:$0xff]
    %v641 = vld [vmem:[#allocation7 + $0x10] sm:$0xff]
    %v642 = vld [vmem:[#allocation7 + $0x18] sm:$0xff]
    %v643 = vld [vmem:[#allocation7 + $0x20] sm:$0xff]
    %v644 = vld [vmem:[#allocation7 + $0x28] sm:$0xff]
    %v645 = vld [vmem:[#allocation7 + $0x30] sm:$0xff]
    %v646 = vld [vmem:[#allocation7 + $0x38] sm:$0xff]
    %vm656 = vcmask 1046528
    %v657 = vrot.slane %v630, 1
    %v658 = vrot.slane %v631, 1
    %v659 = vsel %vm656, %v657, %v658
    %v660 = vrot.slane %v632, 1
    %v661 = vsel %vm656, %v658, %v660
    %v662 = vrot.slane %v633, 1
    %v663 = vsel %vm656, %v660, %v662
    %v664 = vrot.slane %v634, 1
    %v665 = vsel %vm656, %v662, %v664
    %v666 = vrot.slane %v635, 1
    %v667 = vsel %vm656, %v664, %v666
    %v668 = vrot.slane %v636, 1
    %v669 = vsel %vm656, %v666, %v668
    %v670 = vrot.slane %v637, 1
    %v671 = vsel %vm656, %v668, %v670
    %v672 = vrot.slane %v638, 1
    %v673 = vsel %vm656, %v670, %v672
    %v682 = vsub.f32 %v630, %v659
    %v683 = vsub.f32 %v631, %v661
    %v684 = vsub.f32 %v632, %v663
    %v685 = vsub.f32 %v633, %v665
    %v686 = vsub.f32 %v634, %v667
    %v687 = vsub.f32 %v635, %v669
    %v688 = vsub.f32 %v636, %v671
    %v689 = vsub.f32 %v637, %v673
    %v690 = vadd.f32 %v639, %v682
    %v691 = vadd.f32 %v640, %v683
    %v692 = vadd.f32 %v641, %v684
    %v693 = vadd.f32 %v642, %v685
    %v694 = vadd.f32 %v643, %v686
    %v695 = vadd.f32 %v644, %v687
    %v696 = vadd.f32 %v645, %v688
    %v697 = vadd.f32 %v646, %v689
    %698 = vst [vmem:[#allocation7] sm:$0xff] %v690
    %699 = vst [vmem:[#allocation7 + $0x8] sm:$0xff] %v691
    %700 = vst [vmem:[#allocation7 + $0x10] sm:$0xff] %v692
    %701 = vst [vmem:[#allocation7 + $0x18] sm:$0xff] %v693
    %702 = vst [vmem:[#allocation7 + $0x20] sm:$0xff] %v694
    %703 = vst [vmem:[#allocation7 + $0x28] sm:$0xff] %v695
    %704 = vst [vmem:[#allocation7 + $0x30] sm:$0xff] %v696
    %705 = vst [vmem:[#allocation7 + $0x38] sm:$0xff] %v697
    // Predicated region
    $region22: #{tpu_custom_call.1} parent=1 // pred_check
      _
    $region23: #{tpu_custom_call.1} parent=1 // pred_check_branch
      %707 = sbr.rel (0) target = $region25
    $region24: #{tpu_custom_call.1} parent=1 // pred_region
      %s709 = ssub.s32 1024, 1024
      %710 = vsyncadd [#allocation4], %s709
      %s711 = sshll.u32 [#allocation7], 4
      %s712 = int_to_ptr.vmem [resolvable:$true] %s711
      %717 = dma.vmem_to_hbm [thread:$0]  %s712, 1024, %s2, [#allocation4], 128, 128, 8
    $region25: #{tpu_custom_call.1} parent=1 // pred_fallthru
      _
    // Predicated region
    $region26: #{tpu_custom_call.1} parent=1 // pred_check
      _
    $region27: #{tpu_custom_call.1} parent=1 // pred_check_branch
      %719 = sbr.rel (0) target = $region29
    $region28: #{tpu_custom_call.1} parent=1 // pred_region
      %720 = dma.done [#allocation4], 1024
    $region29: #{tpu_custom_call.1} parent=1 // pred_fallthru
      _
    %721 = vsyncpa [#allocation3], 1
    %722 = vsyncpa [#allocation6], 1
    %723 = vsyncpa [#allocation4], 1

</llo_original>
